<compile_context>
chip_gen: v6e
topology: v6e:2x2x1
jax: 0.10.0
libtpu: 0.0.40
codegen_flags: <defaults>
</compile_context>

<pallas_src>
import functools

import jax
import jax.numpy as jnp
from jax.experimental import pallas as pl
from jax.experimental.pallas import tpu as pltpu


def _round_up(x, m):
    return ((x + m - 1) // m) * m


def _vmem_capacity_bytes():
    """Generation-aware VMEM capacity (v5e/v6e: 128 MiB, v7x: 64 MiB per TC)."""
    try:
        return int(pltpu.get_tpu_info().vmem_capacity_bytes)
    except Exception:
        return 64 << 20  # conservative fallback: v7x per-TensorCore VMEM


def _fused_gcn_kernel(resident_a, x0_hbm, a_in, w_ref, b_ref, o_ref, *scratch):
    """Grid = (layer l, row-tile r, k-tile k); all axes 'arbitrary' (stateful scratch).

    The output ref (constant index map, full array, bf16) doubles as the resident
    activation X: initialized from x0 by DMA at the very first grid step, read to
    build H = X @ W[l] at the start of every layer, overwritten row tile by row tile
    with the new activations, and written back to HBM exactly once at grid end.
    """
    if resident_a:
        a_sc, h_sc, acc_sc, sem = scratch
    else:
        h_sc, acc_sc, sem = scratch
        a_sc = None

    l = pl.program_id(0)
    r = pl.program_id(1)
    k = pl.program_id(2)
    nk = pl.num_programs(2)

    # One-time prologue: DMA x0 straight into the resident output/activation buffer
    # (no double-buffered x0 BlockSpec, no full-array VPU copy); when A_hat fits in
    # VMEM, DMA it once so it is NOT re-streamed for every layer.
    @pl.when(jnp.logical_and(l == 0, jnp.logical_and(r == 0, k == 0)))
    def _():
        cp_x = pltpu.make_async_copy(x0_hbm, o_ref, sem.at[0])
        cp_x.start()
        if resident_a:
            cp_a = pltpu.make_async_copy(a_in, a_sc, sem.at[1])
            cp_a.start()
            cp_a.wait()
        cp_x.wait()

    # Start of each layer: build H = X @ W[l] one k-block per grid step (spread over
    # the k axis -> overlaps with row tile 0's A work instead of one big bubble).
    @pl.when(r == 0)
    def _():
        h_sc[k] = jnp.dot(
            o_ref[k], w_ref[0], preferred_element_type=jnp.float32
        ).astype(h_sc.dtype)

    # Init the f32 accumulator at the start of every row tile's K reduction.
    @pl.when(k == 0)
    def _():
        acc_sc[...] = jnp.zeros_like(acc_sc)

    # acc += A_hat[r, k] @ H[k]   (bf16 operands on the MXU, f32 accumulation)
    a_tile = a_sc[r * nk + k] if resident_a else a_in[0]
    acc_sc[...] += jnp.dot(a_tile, h_sc[k], preferred_element_type=jnp.float32)

    # Finalize the row tile: bias + ReLU (dropout p=0.0 is identity), update the
    # resident activation / output in place.
    @pl.when(k == nk - 1)
    def _():
        y = jnp.maximum(acc_sc[...] + b_ref[0], 0.0)
        o_ref[r] = y.astype(o_ref.dtype)


def fused_static_gcn(a_blocks, x0_blocks, w_stack, b_stack):
    """All GCN layers fused into a single pallas_call.

    a_blocks : [nr*nk, T, T]  pre-blocked, zero-padded normalized adjacency (bf16)
    x0_blocks: [nr, T, Fp]    pre-blocked, zero-padded initial node features (bf16)
    w_stack  : [L, Fp, Fp]    stacked weights in X @ W orientation (== PyTorch W^T)
    b_stack  : [L, 1, Fp]     stacked biases (f32)
    returns  : [nr, T, Fp]    bf16 final-layer activations
    """
    nr, tile, f_pad = x0_blocks.shape
    nk = a_blocks.shape[0] // nr          # == nr (square tiling of A_hat)
    n_layers = w_stack.shape[0]
    n_pad = nr * tile

    # Generation-aware VMEM budget with headroom (compiler scratch / semaphores):
    # ~48 MiB on v7x (64 MiB parts), ~96 MiB on v5e/v6e (128 MiB parts).
    cap = _vmem_capacity_bytes()
    budget = min(cap - (16 << 20), (cap * 3) // 4)

    common_bytes = (
        2 * n_pad * f_pad * 2      # output / resident activation (worst case 2 bufs)
        + n_pad * f_pad * 2        # h_sc (resident H)
        + tile * f_pad * 4         # f32 accumulator
        + 2 * f_pad * f_pad * 2    # W[l] (double-buffered)
        + 2 * f_pad * 4            # b[l]
    )
    resident_bytes = common_bytes + n_pad * n_pad * 2     # A_hat fully resident
    streamed_bytes = common_bytes + 2 * tile * tile * 2   # A_hat tiles, double-buffered
    resident_a = resident_bytes <= (budget * 9) // 10
    needed = resident_bytes if resident_a else streamed_bytes
    # TODO(synk): no graceful path yet for graphs whose resident activations (Np*Fp)
    # alone exceed the per-core VMEM budget (per-layer calls / tiled H residency).
    vmem_limit = int(min(budget, max(32 << 20, (needed * 5) // 4)))

    grid = (n_layers, nr, nk)

    flops = n_layers * (2 * n_pad * f_pad * f_pad + 2 * n_pad * n_pad * f_pad)
    a_reads = 1 if resident_a else n_layers
    bytes_accessed = (
        a_reads * n_pad * n_pad * 2       # A_hat
        + n_pad * f_pad * 2               # x0
        + n_layers * f_pad * f_pad * 2    # weights
        + n_layers * f_pad * 4            # biases
        + n_pad * f_pad * 2               # single bf16 output writeback
    )

    if resident_a:
        a_spec = pl.BlockSpec(memory_space=pl.ANY)   # DMA'd once into VMEM scratch
        scratch = [
            pltpu.VMEM((nr * nk, tile, tile), jnp.bfloat16),  # resident A_hat
            pltpu.VMEM((nk, tile, f_pad), jnp.bfloat16),      # resident H = X @ W[l]
            pltpu.VMEM((tile, f_pad), jnp.float32),           # f32 accumulator
            pltpu.SemaphoreType.DMA((2,)),
        ]
    else:
        a_spec = pl.BlockSpec(
            (1, tile, tile), lambda l, r, k, _nk=nk: (r * _nk + k, 0, 0)
        )
        scratch = [
            pltpu.VMEM((nk, tile, f_pad), jnp.bfloat16),
            pltpu.VMEM((tile, f_pad), jnp.float32),
            pltpu.SemaphoreType.DMA((2,)),
        ]

    return pl.pallas_call(
        functools.partial(_fused_gcn_kernel, resident_a),
        out_shape=jax.ShapeDtypeStruct((nr, tile, f_pad), jnp.bfloat16),
        grid=grid,
        in_specs=[
            pl.BlockSpec(memory_space=pl.ANY),                           # x0 (one DMA)
            a_spec,                                                      # A_hat
            pl.BlockSpec((1, f_pad, f_pad), lambda l, r, k: (l, 0, 0)),  # W[l]
            pl.BlockSpec((1, 1, f_pad), lambda l, r, k: (l, 0, 0)),      # b[l]
        ],
        # Constant index map: the output block is resident across the whole grid
        # (it is also the activation buffer) and written back to HBM exactly once.
        out_specs=pl.BlockSpec((nr, tile, f_pad), lambda l, r, k: (0, 0, 0)),
        scratch_shapes=scratch,
        compiler_params=pltpu.CompilerParams(
            # Layer/row/k axes all carry state through VMEM -> must stay "arbitrary".
            dimension_semantics=("arbitrary", "arbitrary", "arbitrary"),
            vmem_limit_bytes=vmem_limit,
        ),
        cost_estimate=pl.CostEstimate(
            flops=flops, transcendentals=0, bytes_accessed=bytes_accessed
        ),
    )(x0_blocks, a_blocks, w_stack, b_stack)


def build_normalized_adjacency(edge_index, num_nodes):
    """Dense A_hat = D^{-1/2}(A + I)D^{-1/2}, matching PyG gcn_norm (glue, plain JAX)."""
    src, dst = edge_index[0], edge_index[1]
    loops = jnp.arange(num_nodes, dtype=edge_index.dtype)
    src = jnp.concatenate([src, loops])
    dst = jnp.concatenate([dst, loops])
    ones = jnp.ones(src.shape[0], dtype=jnp.float32)
    deg = jnp.zeros((num_nodes,), jnp.float32).at[dst].add(ones)
    dinv = jnp.where(deg > 0, jax.lax.rsqrt(deg), 0.0)
    norm = dinv[src] * dinv[dst]
    # out[dst] = sum over edges (src -> dst) of norm * h[src]  =>  A_hat[dst, src] += norm
    a_hat = jnp.zeros((num_nodes, num_nodes), jnp.float32).at[dst, src].add(norm)
    return a_hat


@functools.partial(jax.jit, static_argnames=("num_nodes",))
def static_gnn_forward(node_feature, edge_index, weights, biases, num_nodes):
    """StaticGNN.forward equivalent.

    Returns (node_feature_out, node_states_layer) — the second is the .clone() stored
    in batch.node_states[layer_id]; both equal the final x.
    """
    n, f = node_feature.shape
    a_hat = build_normalized_adjacency(edge_index, num_nodes)

    # Tile-first padding: pick the tile size (512, or a single full tile for small
    # graphs) and pad N to a multiple of it, so tiles never fall back to 128.
    # Zero padding is exact: padded rows/cols of A_hat are zero and never contaminate
    # real nodes; padded feature columns stay zero through every layer.
    n_min = _round_up(max(n, 8), 128)
    tile = n_min if n_min <= 512 else 512
    n_pad = _round_up(n_min, tile)
    f_pad = _round_up(max(f, 8), 128)
    nr = n_pad // tile

    a_p = (
        jnp.zeros((n_pad, n_pad), jnp.float32).at[:n, :n].set(a_hat).astype(jnp.bfloat16)
    )
    a_blocks = (
        a_p.reshape(nr, tile, nr, tile).transpose(0, 2, 1, 3).reshape(nr * nr, tile, tile)
    )
    x_blocks = (
        jnp.zeros((n_pad, f_pad), jnp.float32)
        .at[:n, :f].set(node_feature)
        .astype(jnp.bfloat16)
        .reshape(nr, tile, f_pad)
    )
    w_stack = jnp.stack(
        [jnp.zeros((f_pad, f_pad), jnp.float32).at[:f, :f].set(w) for w in weights]
    ).astype(jnp.bfloat16)                                   # [L, Fp, Fp] bf16
    b_stack = jnp.stack(
        [jnp.zeros((1, f_pad), jnp.float32).at[:, :f].set(b) for b in biases]
    )                                                        # [L, 1, Fp] f32

    out_blocks = fused_static_gcn(a_blocks, x_blocks, w_stack, b_stack)
    x = out_blocks.reshape(n_pad, f_pad)[:n, :f].astype(jnp.float32)
    node_states_layer = x + 0.0  # batch.node_states[layer_id] = x.clone()
    return x, node_states_layer


if __name__ == "__main__":
    # Small shapes consistent with the module: N nodes, dim_in features, 2 GCN layers.
    N = 16          # number of graph nodes
    DIM_IN = 32     # node feature dim (GCNConv(dim_in, dim_in))
    NUM_LAYERS = 2
    NUM_EDGES = 48

    key = jax.random.PRNGKey(0)
    k_x, k_e, k_w, k_b = jax.random.split(key, 4)

    node_feature = jax.random.normal(k_x, (N, DIM_IN), dtype=jnp.float32)
    edge_index = jax.random.randint(k_e, (2, NUM_EDGES), 0, N, dtype=jnp.int32)

    # Deterministic parameter init, one (W, b) per GCNConv layer (W stored in X@W form).
    weights, biases = [], []
    wkeys = jax.random.split(k_w, NUM_LAYERS)
    bkeys = jax.random.split(k_b, NUM_LAYERS)
    limit = (6.0 / (DIM_IN + DIM_IN)) ** 0.5
    for i in range(NUM_LAYERS):
        w = jax.random.uniform(wkeys[i], (DIM_IN, DIM_IN), jnp.float32, -limit, limit)
        b = 0.1 * jax.random.normal(bkeys[i], (1, DIM_IN), dtype=jnp.float32)
        weights.append(w)
        biases.append(b)

    out_x, out_states = static_gnn_forward(
        node_feature, edge_index, tuple(weights), tuple(biases), num_nodes=N
    )
    jax.block_until_ready(out_x)
    jax.block_until_ready(out_states)

    # Sanity check vs a pure-JAX reference mirroring the kernel numerics
    # (bf16 matmul operands / activations, f32 accumulation, f32 epilogue, bf16 store).
    a_ref = build_normalized_adjacency(edge_index, N).astype(jnp.bfloat16)
    x_ref = node_feature
    for w, b in zip(weights, biases):
        h = jnp.dot(
            x_ref.astype(jnp.bfloat16), w.astype(jnp.bfloat16),
            preferred_element_type=jnp.float32,
        ).astype(jnp.bfloat16)
        y = jnp.dot(a_ref, h, preferred_element_type=jnp.float32) + b
        x_ref = jnp.maximum(y, 0.0).astype(jnp.bfloat16).astype(jnp.float32)

    assert out_x.shape == (N, DIM_IN)
    assert jnp.allclose(out_x, x_ref, atol=2e-2, rtol=2e-2)
    assert jnp.allclose(out_states, out_x)

    print("KERNEL_OK")
</pallas_src>

<mosaic_0001>
module attributes {stable_mosaic.version = 11 : i64} {
  func.func private @main(%arg0: i32) attributes {dimension_semantics = [#tpu.dimension_semantics<core_parallel>], iteration_bounds = array<i64: 2>, tpu.core_type = #tpu.core_type<sc_scalar_subcore>, window_params = []} {
    return
  }
}

module attributes {stable_mosaic.version = 11 : i64} {
  func.func private @main(%arg0: i32) attributes {dimension_semantics = [#tpu.dimension_semantics<core_parallel>], iteration_bounds = array<i64: 2>, tpu.core_type = #tpu.core_type<sc_scalar_subcore>, window_params = []} {
    return
  }
}

module attributes {stable_mosaic.version = 11 : i64} {
  func.func @_fused_gcn_kernel(%arg0: i32, %arg1: i32, %arg2: i32, %arg3: memref<1x128x128xbf16, #tpu.memory_space<any>>, %arg4: memref<1x128x128xbf16, #tpu.memory_space<any>>, %arg5: memref<1x128x128xbf16, #tpu.memory_space<vmem>>, %arg6: memref<1x1x128xf32, #tpu.memory_space<vmem>>, %arg7: memref<1x128x128xbf16, #tpu.memory_space<vmem>>, %arg8: memref<1x128x128xbf16, #tpu.memory_space<vmem>>, %arg9: memref<1x128x128xbf16, #tpu.memory_space<vmem>>, %arg10: memref<128x128xf32, #tpu.memory_space<vmem>>, %arg11: memref<2x!tpu.dma_semaphore, #tpu.memory_space<semaphore_mem>>) attributes {dimension_semantics = [#tpu.dimension_semantics<arbitrary>, #tpu.dimension_semantics<arbitrary>, #tpu.dimension_semantics<arbitrary>], iteration_bounds = array<i64: 2, 1, 1>, scalar_prefetch = 0 : i64, scratch_operands = 4 : i64, tpu.core_type = #tpu.core_type<tc>, window_params = [{}, {}, {transform_indices = @transform_2, window_bounds = array<i64: 1, 128, 128>}, {transform_indices = @transform_3, window_bounds = array<i64: 1, 1, 128>}, {pipeline_mode = #tpu.pipeline_mode<synchronous>, transform_indices = @transform_4, window_bounds = array<i64: 1, 128, 128>}]} {
    %c0_i32 = arith.constant 0 : i32
    %0 = arith.cmpi eq, %arg0, %c0_i32 : i32
    %c0_i32_0 = arith.constant 0 : i32
    %1 = arith.cmpi eq, %arg1, %c0_i32_0 : i32
    %c0_i32_1 = arith.constant 0 : i32
    %2 = arith.cmpi eq, %arg2, %c0_i32_1 : i32
    %3 = arith.andi %1, %2 : i1
    %4 = arith.andi %0, %3 : i1
    %5 = arith.extui %4 : i1 to i32
    %c0_i32_2 = arith.constant 0 : i32
    %6 = arith.cmpi ne, %5, %c0_i32_2 : i32
    scf.if %6 {
      %c0_i32_16 = arith.constant 0 : i32
      %28 = tpu.memref_slice %arg11[%c0_i32_16] : memref<2x!tpu.dma_semaphore, #tpu.memory_space<semaphore_mem>> -> memref<1x!tpu.dma_semaphore, #tpu.memory_space<semaphore_mem>>
      %29 = tpu.memref_squeeze %28 : memref<1x!tpu.dma_semaphore, #tpu.memory_space<semaphore_mem>> -> memref<!tpu.dma_semaphore, #tpu.memory_space<semaphore_mem>>
      tpu.enqueue_dma source(%arg3 : memref<1x128x128xbf16, #tpu.memory_space<any>>) target(%arg7 : memref<1x128x128xbf16, #tpu.memory_space<vmem>>) target_semaphore(%29 : memref<!tpu.dma_semaphore, #tpu.memory_space<semaphore_mem>>)
      %c1_i32_17 = arith.constant 1 : i32
      %30 = tpu.memref_slice %arg11[%c1_i32_17] : memref<2x!tpu.dma_semaphore, #tpu.memory_space<semaphore_mem>> -> memref<1x!tpu.dma_semaphore, #tpu.memory_space<semaphore_mem>>
      %31 = tpu.memref_squeeze %30 : memref<1x!tpu.dma_semaphore, #tpu.memory_space<semaphore_mem>> -> memref<!tpu.dma_semaphore, #tpu.memory_space<semaphore_mem>>
      tpu.enqueue_dma source(%arg4 : memref<1x128x128xbf16, #tpu.memory_space<any>>) target(%arg8 : memref<1x128x128xbf16, #tpu.memory_space<vmem>>) target_semaphore(%31 : memref<!tpu.dma_semaphore, #tpu.memory_space<semaphore_mem>>)
      %c1_i32_18 = arith.constant 1 : i32
      %32 = tpu.memref_slice %arg11[%c1_i32_18] : memref<2x!tpu.dma_semaphore, #tpu.memory_space<semaphore_mem>> -> memref<1x!tpu.dma_semaphore, #tpu.memory_space<semaphore_mem>>
      %33 = tpu.memref_squeeze %32 : memref<1x!tpu.dma_semaphore, #tpu.memory_space<semaphore_mem>> -> memref<!tpu.dma_semaphore, #tpu.memory_space<semaphore_mem>>
      tpu.wait_dma2 semaphore(%33 : memref<!tpu.dma_semaphore, #tpu.memory_space<semaphore_mem>>) src(%arg4 : memref<1x128x128xbf16, #tpu.memory_space<any>>) dst(%arg8 : memref<1x128x128xbf16, #tpu.memory_space<vmem>>)
      %c0_i32_19 = arith.constant 0 : i32
      %34 = tpu.memref_slice %arg11[%c0_i32_19] : memref<2x!tpu.dma_semaphore, #tpu.memory_space<semaphore_mem>> -> memref<1x!tpu.dma_semaphore, #tpu.memory_space<semaphore_mem>>
      %35 = tpu.memref_squeeze %34 : memref<1x!tpu.dma_semaphore, #tpu.memory_space<semaphore_mem>> -> memref<!tpu.dma_semaphore, #tpu.memory_space<semaphore_mem>>
      tpu.wait_dma2 semaphore(%35 : memref<!tpu.dma_semaphore, #tpu.memory_space<semaphore_mem>>) src(%arg3 : memref<1x128x128xbf16, #tpu.memory_space<any>>) dst(%arg7 : memref<1x128x128xbf16, #tpu.memory_space<vmem>>)
    } else {
    }
    %c0_i32_3 = arith.constant 0 : i32
    %7 = arith.cmpi eq, %arg1, %c0_i32_3 : i32
    %8 = arith.extui %7 : i1 to i32
    %c0_i32_4 = arith.constant 0 : i32
    %9 = arith.cmpi ne, %8, %c0_i32_4 : i32
    scf.if %9 {
      %28 = arith.index_cast %arg2 : i32 to index
      %c0_16 = arith.constant 0 : index
      %c0_17 = arith.constant 0 : index
      %29 = vector.load %arg7[%28, %c0_16, %c0_17] : memref<1x128x128xbf16, #tpu.memory_space<vmem>>, vector<1x128x128xbf16>
      %30 = vector.shape_cast %29 : vector<1x128x128xbf16> to vector<128x128xbf16>
      %c0_18 = arith.constant 0 : index
      %c0_19 = arith.constant 0 : index
      %c0_20 = arith.constant 0 : index
      %31 = vector.load %arg5[%c0_18, %c0_19, %c0_20] : memref<1x128x128xbf16, #tpu.memory_space<vmem>>, vector<1x128x128xbf16>
      %32 = vector.shape_cast %31 : vector<1x128x128xbf16> to vector<128x128xbf16>
      %cst_21 = arith.constant dense<0.000000e+00> : vector<128x128xf32>
      %33 = tpu.matmul %30, %32, %cst_21 {dimension_numbers = #tpu.dot_dimension_numbers<[1], [0], [0], [1], [0, 0, 1, 1], [], []>} : vector<128x128xbf16>, vector<128x128xbf16>, vector<128x128xf32> -> vector<128x128xf32>
      %34 = arith.truncf %33 : vector<128x128xf32> to vector<128x128xbf16>
      %35 = arith.index_cast %arg2 : i32 to index
      %c0_22 = arith.constant 0 : index
      %c0_23 = arith.constant 0 : index
      %36 = vector.load %arg9[%35, %c0_22, %c0_23] : memref<1x128x128xbf16, #tpu.memory_space<vmem>>, vector<1x128x128xbf16>
      %37 = vector.shape_cast %36 : vector<1x128x128xbf16> to vector<128x128xbf16>
      %38 = vector.shape_cast %34 : vector<128x128xbf16> to vector<1x128x128xbf16>
      tpu.vector_store %arg9[%35, %c0_22, %c0_23], %38 {strides = array<i32>} : memref<1x128x128xbf16, #tpu.memory_space<vmem>>, vector<1x128x128xbf16>,
    } else {
    }
    %c0_i32_5 = arith.constant 0 : i32
    %10 = arith.cmpi eq, %arg2, %c0_i32_5 : i32
    %11 = arith.extui %10 : i1 to i32
    %c0_i32_6 = arith.constant 0 : i32
    %12 = arith.cmpi ne, %11, %c0_i32_6 : i32
    scf.if %12 {
      %cst_16 = arith.constant 0.000000e+00 : f32
      %28 = vector.broadcast %cst_16 : f32 to vector<128x128xf32>
      %c0_17 = arith.constant 0 : index
      %c0_18 = arith.constant 0 : index
      %29 = vector.load %arg10[%c0_17, %c0_18] : memref<128x128xf32, #tpu.memory_space<vmem>>, vector<128x128xf32>
      tpu.vector_store %arg10[%c0_17, %c0_18], %28 {strides = array<i32>} : memref<128x128xf32, #tpu.memory_space<vmem>>, vector<128x128xf32>,
    } else {
    }
    %c1_i32 = arith.constant 1 : i32
    %13 = arith.muli %arg1, %c1_i32 : i32
    %14 = arith.addi %13, %arg2 : i32
    %15 = arith.index_cast %14 : i32 to index
    %c0 = arith.constant 0 : index
    %c0_7 = arith.constant 0 : index
    %16 = vector.load %arg8[%15, %c0, %c0_7] : memref<1x128x128xbf16, #tpu.memory_space<vmem>>, vector<1x128x128xbf16>
    %17 = vector.shape_cast %16 : vector<1x128x128xbf16> to vector<128x128xbf16>
    %c0_8 = arith.constant 0 : index
    %c0_9 = arith.constant 0 : index
    %18 = vector.load %arg10[%c0_8, %c0_9] : memref<128x128xf32, #tpu.memory_space<vmem>>, vector<128x128xf32>
    %19 = arith.index_cast %arg2 : i32 to index
    %c0_10 = arith.constant 0 : index
    %c0_11 = arith.constant 0 : index
    %20 = vector.load %arg9[%19, %c0_10, %c0_11] : memref<1x128x128xbf16, #tpu.memory_space<vmem>>, vector<1x128x128xbf16>
    %21 = vector.shape_cast %20 : vector<1x128x128xbf16> to vector<128x128xbf16>
    %cst = arith.constant dense<0.000000e+00> : vector<128x128xf32>
    %22 = tpu.matmul %17, %21, %cst {dimension_numbers = #tpu.dot_dimension_numbers<[1], [0], [0], [1], [0, 0, 1, 1], [], []>} : vector<128x128xbf16>, vector<128x128xbf16>, vector<128x128xf32> -> vector<128x128xf32>
    %23 = arith.addf %18, %22 : vector<128x128xf32>
    %c0_12 = arith.constant 0 : index
    %c0_13 = arith.constant 0 : index
    %24 = vector.load %arg10[%c0_12, %c0_13] : memref<128x128xf32, #tpu.memory_space<vmem>>, vector<128x128xf32>
    tpu.vector_store %arg10[%c0_12, %c0_13], %23 {strides = array<i32>} : memref<128x128xf32, #tpu.memory_space<vmem>>, vector<128x128xf32>,
    %c0_i32_14 = arith.constant 0 : i32
    %25 = arith.cmpi eq, %arg2, %c0_i32_14 : i32
    %26 = arith.extui %25 : i1 to i32
    %c0_i32_15 = arith.constant 0 : i32
    %27 = arith.cmpi ne, %26, %c0_i32_15 : i32
    scf.if %27 {
      %c0_16 = arith.constant 0 : index
      %c0_17 = arith.constant 0 : index
      %28 = vector.load %arg10[%c0_16, %c0_17] : memref<128x128xf32, #tpu.memory_space<vmem>>, vector<128x128xf32>
      %c0_18 = arith.constant 0 : index
      %c0_19 = arith.constant 0 : index
      %c0_20 = arith.constant 0 : index
      %29 = vector.load %arg6[%c0_18, %c0_19, %c0_20] : memref<1x1x128xf32, #tpu.memory_space<vmem>>, vector<1x1x128xf32>
      %30 = vector.shape_cast %29 : vector<1x1x128xf32> to vector<1x128xf32>
      %31 = vector.broadcast %30 : vector<1x128xf32> to vector<128x128xf32>
      %32 = arith.addf %28, %31 : vector<128x128xf32>
      %cst_21 = arith.constant 0.000000e+00 : f32
      %33 = vector.broadcast %cst_21 : f32 to vector<128x128xf32>
      %34 = arith.maximumf %32, %33 : vector<128x128xf32>
      %35 = arith.truncf %34 : vector<128x128xf32> to vector<128x128xbf16>
      %36 = arith.index_cast %arg1 : i32 to index
      %c0_22 = arith.constant 0 : index
      %c0_23 = arith.constant 0 : index
      %37 = vector.load %arg7[%36, %c0_22, %c0_23] : memref<1x128x128xbf16, #tpu.memory_space<vmem>>, vector<1x128x128xbf16>
      %38 = vector.shape_cast %37 : vector<1x128x128xbf16> to vector<128x128xbf16>
      %39 = vector.shape_cast %35 : vector<128x128xbf16> to vector<1x128x128xbf16>
      tpu.vector_store %arg7[%36, %c0_22, %c0_23], %39 {strides = array<i32>} : memref<1x128x128xbf16, #tpu.memory_space<vmem>>, vector<1x128x128xbf16>,
    } else {
    }
    return
  }
  func.func @transform_2(%arg0: i32, %arg1: i32, %arg2: i32) -> (i32, i32, i32) {
    %c0_i32 = arith.constant 0 : i32
    %c0_i32_0 = arith.constant 0 : i32
    %c0_i32_1 = arith.constant 0 : i32
    return %arg0, %c0_i32, %c0_i32_0 : i32, i32, i32
  }
  func.func @transform_3(%arg0: i32, %arg1: i32, %arg2: i32) -> (i32, i32, i32) {
    %c0_i32 = arith.constant 0 : i32
    %c0_i32_0 = arith.constant 0 : i32
    %c0_i32_1 = arith.constant 0 : i32
    return %arg0, %c0_i32, %c0_i32_0 : i32, i32, i32
  }
  func.func @transform_4(%arg0: i32, %arg1: i32, %arg2: i32) -> (i32, i32, i32) {
    %c0_i32 = arith.constant 0 : i32
    %c0_i32_0 = arith.constant 0 : i32
    %c0_i32_1 = arith.constant 0 : i32
    %c0_i32_2 = arith.constant 0 : i32
    return %c0_i32, %c0_i32_0, %c0_i32_1 : i32, i32, i32
  }
}

</mosaic_0001>

<llo_original>
// kernel: mul.1
$region0: #{mul.1}
  #allocation0 [shape = 's32[1]{0}', space=sflag, size = 0x4, scoped, tag = 'scoped memory for mul.1']
  %s0 = inlined_call_operand.vmem [shape: f32[64], index: 0, kind: input, shape index: {}]
  %s1 = inlined_call_operand.vmem [shape: f32[64], index: 1, kind: input, shape index: {}]
  %s2 = inlined_call_operand.vmem [shape: f32[64], index: 2, kind: output, shape index: {}]
  %v3 = vld [vmem:[%s0] sm:$0x1]
  %v4 = vld [vmem:[%s1] sm:$0x1]
  %5 = xla_tuple %v3, %v4
  %6 = xla_tuple %5
  %v7 = vmul.f32 %v3, %v4
  %8 = xla_tuple %v7
  %9 = vst [vmem:[%s2] sm:$0x1] %v7

// kernel: static_gnn_forward.1
$region0: #{static_gnn_forward.1}
  #allocation0 [shape = 'u32[]', space=smem, size = 0x4, offset = 0x4, fixed_abs, tag = 'smem constant byte address 0x4 - core index']
  #allocation1 [shape = 'u32[144,128]{1,0:T(1,128)}', space=vmem, size = 0x12000, scoped, tag = 'internal scratch']
  #allocation2 [shape = 'bf16[1,128,128]{2,1,0:T(8,128)(2,1)}', space=vmem, size = 0x8000, scoped, tag = 'scratch operand']
  #allocation3 [shape = 'bf16[1,128,128]{2,1,0:T(8,128)(2,1)}', space=vmem, size = 0x8000, scoped, tag = 'scratch operand']
  #allocation4 [shape = 'f32[128,128]{1,0:T(8,128)}', space=vmem, size = 0x10000, scoped, tag = 'scratch operand']
  #allocation5 [shape = 's32[2]{0}', space=sflag, size = 0x8, scoped, tag = 'scratch operand']
  #allocation6 [shape = 's32[]', space=sflag, size = 0x4, offset = 0, fixed_abs, tag = 'sflag constant byte address 0x0 - dummy sync flag']
  #allocation7 [shape = 's32[]', space=sflag, size = 0x4, offset = 0, fixed_abs, tag = 'sflag constant byte address 0x0 - dummy sync flag']
  %s0 = inlined_call_operand.vmem [shape: bf16[1,128,128], index: 0, kind: input, shape index: {}]
  %s1 = inlined_call_operand.vmem [shape: bf16[1,128,128], index: 1, kind: input, shape index: {}]
  %s2 = inlined_call_operand.vmem [shape: bf16[2,128,128], index: 2, kind: input, shape index: {}]
  %s3 = inlined_call_operand.vmem [shape: f32[2,1,128], index: 3, kind: input, shape index: {}]
  %s4 = inlined_call_operand.vmem [shape: bf16[1,128,128], index: 4, kind: output, shape index: {}]
  %s5 = sld [smem:[#allocation0]]
  $region125: #{static_gnn_forward.1} parent=0
    _
  %s7 = ssub.s32 1, %s5
  %s8 = scalar_select 0, %s7, %s5
  loop: start=0, step=1, limit=4
  $region2: #{static_gnn_forward.1} parent=0 // loop_pre_header
    _
  $region3: #{static_gnn_forward.1} parent=0 // loop_header
    %s10 = sphi 0, %s14
    %p11 = scmp.ge.s32.totalorder %s10, 4
    %s17 = sphi 0, %s36
    %s18 = sphi 0, %s32
    %s19 = sphi 0, %s28
    %s20 = sphi 0, %s17
    %s21 = sphi 0, %s18
    %s22 = sphi 0, %s19
    %s23 = sphi 0, %s20
    %s24 = sphi 0, %s21
    %s25 = sphi 0, %s22
    %s39 = sphi 0, %s41
    %s42 = sphi 0, %s39
    %s43 = sphi 0, %s42
    %s59 = sphi 0, %s43
    %s65 = sphi 0, %s67
    %s68 = sphi 0, %s65
    %s69 = sphi 0, %s68
    %s85 = sphi 0, %s69
    %s89 = sphi 0, %s89
    %s91 = sphi 0, %s89
    %s92 = sphi 0, %s91
    %s106 = sphi 0, %s92
  $region4: #{static_gnn_forward.1} parent=0 // loop_header_branch
    %13 = sbr.rel (%p11) target = $region8
  $region5: #{static_gnn_forward.1} parent=0 // loop_body
    %s15 = ssub.s32 %s10, 1
    %s16 = ssub.s32 %s10, 2
    %s26 = sadd.s32 1, %s19
    %p27 = scmp.ge.s32.totalorder %s26, 1
    %s28 = scalar_select %p27, 0, %s26
    %s29 = sadd.s32 1, %s18
    %s30 = scalar_select %p27, %s29, %s18
    %p31 = scmp.ge.s32.totalorder %s30, 1
    %s32 = scalar_select %p31, 0, %s30
    %s33 = sadd.s32 1, %s17
    %s34 = scalar_select %p31, %s33, %s17
    %p35 = scmp.ge.s32.totalorder %s34, 2
    %s36 = scalar_select %p35, 0, %s34
    %s37 = ssub.s32 %s17, %s36
    %p38 = scmp.eq.s32.totalorder %s37, 0
    %s40 = sadd.s32 %s39, 1
    %s41 = scalar_select %p38, %s39, %s40
    %p44 = pneg %p38
    %p45 = scmp.eq.s32.totalorder %s10, 1
    %p46 = por %p44, %p45
    %p47 = scmp.ne.s32.totalorder %s39, %s42
    %p48 = scmp.eq.s32.totalorder %s10, 0
    %p49 = por %p47, %p48
    %p50 = scmp.ne.s32.totalorder %s39, %s42
    %p51 = scmp.eq.s32.totalorder %s15, 1
    %p52 = por %p50, %p51
    %p53 = scmp.ne.s32.totalorder %s42, %s43
    %p54 = scmp.eq.s32.totalorder %s15, 0
    %p55 = por %p53, %p54
    %p56 = scmp.ne.s32.totalorder %s42, %s43
    %p57 = scmp.eq.s32.totalorder %s16, 1
    %p58 = por %p56, %p57
    %p60 = scmp.ne.s32.totalorder %s43, %s59
    %p61 = scmp.eq.s32.totalorder %s16, 0
    %p62 = por %p60, %p61
    %s63 = ssub.s32 %s17, %s36
    %p64 = scmp.eq.s32.totalorder %s63, 0
    %s66 = sadd.s32 %s65, 1
    %s67 = scalar_select %p64, %s65, %s66
    %p70 = pneg %p64
    %p71 = scmp.eq.s32.totalorder %s10, 1
    %p72 = por %p70, %p71
    %p73 = scmp.ne.s32.totalorder %s65, %s68
    %p74 = scmp.eq.s32.totalorder %s10, 0
    %p75 = por %p73, %p74
    %p76 = scmp.ne.s32.totalorder %s65, %s68
    %p77 = scmp.eq.s32.totalorder %s15, 1
    %p78 = por %p76, %p77
    %p79 = scmp.ne.s32.totalorder %s68, %s69
    %p80 = scmp.eq.s32.totalorder %s15, 0
    %p81 = por %p79, %p80
    %p82 = scmp.ne.s32.totalorder %s68, %s69
    %p83 = scmp.eq.s32.totalorder %s16, 1
    %p84 = por %p82, %p83
    %p86 = scmp.ne.s32.totalorder %s69, %s85
    %p87 = scmp.eq.s32.totalorder %s16, 0
    %p88 = por %p86, %p87
    %s90 = sadd.s32 %s89, 1
    %p93 = scmp.eq.s32.totalorder %s10, 1
    %p94 = scmp.ne.s32.totalorder %s89, %s91
    %p95 = scmp.eq.s32.totalorder %s10, 0
    %p96 = por %p94, %p95
    %p97 = scmp.ne.s32.totalorder %s89, %s91
    %p98 = scmp.eq.s32.totalorder %s15, 1
    %p99 = por %p97, %p98
    %p100 = scmp.ne.s32.totalorder %s91, %s92
    %p101 = scmp.eq.s32.totalorder %s15, 0
    %p102 = por %p100, %p101
    %p103 = scmp.ne.s32.totalorder %s91, %s92
    %p104 = scmp.eq.s32.totalorder %s16, 1
    %p105 = por %p103, %p104
    %p107 = scmp.ne.s32.totalorder %s92, %s106
    %p108 = scmp.eq.s32.totalorder %s16, 0
    %p109 = por %p107, %p108
    %p110 = scmp.le.s32.totalorder 1, %s10
    %p111 = scmp.lt.s32.totalorder %s10, 3
    %p112 = pnand %p110, %p111
    %p113 = pneg %p112
    // Predicated region
    $region9: #{static_gnn_forward.1} parent=5 // pred_check
      _
    $region10: #{static_gnn_forward.1} parent=5 // pred_check_branch
      %115 = sbr.rel (%p112) target = $region12
    $region11: #{static_gnn_forward.1} parent=5 // pred_region
      %s116 = ssub.s32 %s10, 1
    $region12: #{static_gnn_forward.1} parent=5 // pred_fallthru
      _
    %p117 = scmp.lt.s32.totalorder %s10, 2
    // Predicated region
    $region13: #{static_gnn_forward.1} parent=5 // pred_check
      %p118 = pneg %p117
    $region14: #{static_gnn_forward.1} parent=5 // pred_check_branch
      %120 = sbr.rel (%p118) target = $region16
    $region15: #{static_gnn_forward.1} parent=5 // pred_region
      // Predicated region
      $region17: #{static_gnn_forward.1} parent=15 // pred_check
        %p121 = pneg %p49
      $region18: #{static_gnn_forward.1} parent=15 // pred_check_branch
        %123 = sbr.rel (%p121) target = $region20
      $region19: #{static_gnn_forward.1} parent=15 // pred_region
        %p124 = scmp.lt.s32.totalorder %s17, 1
        %s125 = scalar_select %p124, %s17, 1
        %s126 = smul.addr %s125, 16
        %s127 = smul.addr %s126, 4
        %s128 = scalar_lea.vmem %s2, %s127
      $region20: #{static_gnn_forward.1} parent=15 // pred_fallthru
        _
      // Predicated region
      $region21: #{static_gnn_forward.1} parent=15 // pred_check
        %p129 = pneg %p75
      $region22: #{static_gnn_forward.1} parent=15 // pred_check_branch
        %131 = sbr.rel (%p129) target = $region24
      $region23: #{static_gnn_forward.1} parent=15 // pred_region
        %p132 = scmp.lt.s32.totalorder %s17, 1
        %s133 = scalar_select %p132, %s17, 1
        %s134 = scalar_lea.vmem %s3, %s133
      $region24: #{static_gnn_forward.1} parent=15 // pred_fallthru
        _
    $region16: #{static_gnn_forward.1} parent=5 // pred_fallthru
      _
    %p135 = scmp.le.s32.totalorder 1, %s10
    %p136 = scmp.lt.s32.totalorder %s10, 3
    %p137 = pnand %p135, %p136
    %p138 = pneg %p137
    // Predicated region
    $region25: #{static_gnn_forward.1} parent=5 // pred_check
      _
    $region26: #{static_gnn_forward.1} parent=5 // pred_check_branch
      %140 = sbr.rel (%p137) target = $region28
    $region27: #{static_gnn_forward.1} parent=5 // pred_region
      %s141 = ssub.s32 %s10, 1
      %p142 = scmp.lt.s32.totalorder %s20, 1
      %s143 = scalar_select %p142, %s20, 1
      %s144 = smul.addr %s143, 16
      %s145 = smul.addr %s144, 4
      %s146 = scalar_lea.vmem %s2, %s145
      %p147 = pneg %p55
      %p148 = pneg %p52
      %p149 = scmp.lt.s32.totalorder %s20, 1
      %s150 = scalar_select %p149, %s20, 1
      %s151 = scalar_lea.vmem %s3, %s150
      %p152 = pneg %p81
      %p153 = pneg %p78
      %p154 = pneg %p102
      %p155 = pneg %p99
      %p156 = scmp.lt.s32.totalorder %s20, 1
      %s157 = scalar_select %p156, %s20, 1
      %s158 = smul.addr %s157, 16
      %s159 = smul.addr %s158, 4
      %s160 = scalar_lea.vmem %s2, %s159
      %p161 = scmp.lt.s32.totalorder %s20, 1
      %s162 = scalar_select %p161, %s20, 1
      %s163 = scalar_lea.vmem %s3, %s162
      %p165 = scmp.eq.s32.totalorder %s20, 0
      %p166 = scmp.eq.s32.totalorder %s21, 0
      %p167 = scmp.eq.s32.totalorder %s22, 0
      %p168 = pnand %p166, %p167
      %p169 = pneg %p168
      %p170 = pnand %p165, %p169
      %p171 = pneg %p170
      // Predicated region
      $region29: #{static_gnn_forward.1} parent=27 // pred_check
        _
      $region30: #{static_gnn_forward.1} parent=27 // pred_check_branch
        %173 = sbr.rel (%p170) target = $region32
      $region31: #{static_gnn_forward.1} parent=27 // pred_region
        %p175 = scmp.lt.u32.totalorder 64, 8
        %p176 = pneg %p175
        // Predicated region
        $region33: #{static_gnn_forward.1} parent=31 // pred_check
          _
        $region34: #{static_gnn_forward.1} parent=31 // pred_check_branch
          %178 = sbr.rel (%p175) target = $region36
        $region35: #{static_gnn_forward.1} parent=31 // pred_region
          %s194 = sand.u32 64, 7
          %p195 = scmp.eq.s32.totalorder %s194, 0
          // Predicated region
          $region48: #{static_gnn_forward.1} parent=35 // pred_check
            %p196 = pneg %p195
          $region49: #{static_gnn_forward.1} parent=35 // pred_check_branch
            %198 = sbr.rel (%p196) target = $region51
          $region50: #{static_gnn_forward.1} parent=35 // pred_region
            loop: start=0, step=1, limit=1
            $region52: #{static_gnn_forward.1} parent=50 // loop_pre_header
              _
            $region53: #{static_gnn_forward.1} parent=50 // loop_header
              %s200 = sphi 0, %s204
              %p201 = scmp.ge.s32.totalorder %s200, 1
              %s205 = sphi %s0, %s0
              %s206 = sphi %s4, %s4
            $region54: #{static_gnn_forward.1} parent=50 // loop_header_branch
              %203 = sbr.rel (%p201) target = $region58
            $region55: #{static_gnn_forward.1} parent=50 // loop_body
              %v207 = vld [vmem:[%s205] sm:$0xff]
              %208 = vst [vmem:[%s206] sm:$0xff] %v207
              %v209 = vld [vmem:[%s205 + $0x8] sm:$0xff]
              %210 = vst [vmem:[%s206 + $0x8] sm:$0xff] %v209
              %v211 = vld [vmem:[%s205 + $0x10] sm:$0xff]
              %212 = vst [vmem:[%s206 + $0x10] sm:$0xff] %v211
              %v213 = vld [vmem:[%s205 + $0x18] sm:$0xff]
              %214 = vst [vmem:[%s206 + $0x18] sm:$0xff] %v213
              %v215 = vld [vmem:[%s205 + $0x20] sm:$0xff]
              %216 = vst [vmem:[%s206 + $0x20] sm:$0xff] %v215
              %v217 = vld [vmem:[%s205 + $0x28] sm:$0xff]
              %218 = vst [vmem:[%s206 + $0x28] sm:$0xff] %v217
              %v219 = vld [vmem:[%s205 + $0x30] sm:$0xff]
              %220 = vst [vmem:[%s206 + $0x30] sm:$0xff] %v219
              %v221 = vld [vmem:[%s205 + $0x38] sm:$0xff]
              %222 = vst [vmem:[%s206 + $0x38] sm:$0xff] %v221
            $region56: #{static_gnn_forward.1} parent=50 // loop_footer
              %s204 = sadd.s32 1, %s200
            $region57: #{static_gnn_forward.1} parent=50 // loop_footer_branch
              %199 = sbr.rel target = $region53
            $region58: #{static_gnn_forward.1} parent=50 // loop_exit
              _
          $region51: #{static_gnn_forward.1} parent=35 // pred_fallthru
            _
          %p223 = pneg %p195
          // Predicated region
          $region59: #{static_gnn_forward.1} parent=35 // pred_check
            _
          $region60: #{static_gnn_forward.1} parent=35 // pred_check_branch
            %225 = sbr.rel (%p195) target = $region62
          $region61: #{static_gnn_forward.1} parent=35 // pred_region
            %s226 = sand.u32 64, 7
          $region62: #{static_gnn_forward.1} parent=35 // pred_fallthru
            _
        $region36: #{static_gnn_forward.1} parent=31 // pred_fallthru
          _
        // Predicated region
        $region37: #{static_gnn_forward.1} parent=31 // pred_check
          %p179 = pneg %p175
        $region38: #{static_gnn_forward.1} parent=31 // pred_check_branch
          %181 = sbr.rel (%p179) target = $region40
        $region39: #{static_gnn_forward.1} parent=31 // pred_region
          %s182 = sshll.u32 1, 64
          %s183 = ssub.s32 %s182, 1
          loop: start=0, step=1, limit=1
          $region41: #{static_gnn_forward.1} parent=39 // loop_pre_header
            _
          $region42: #{static_gnn_forward.1} parent=39 // loop_header
            %s185 = sphi 0, %s189
            %p186 = scmp.ge.s32.totalorder %s185, 1
            %s190 = sphi %s0, %s0
            %s191 = sphi %s4, %s4
          $region43: #{static_gnn_forward.1} parent=39 // loop_header_branch
            %188 = sbr.rel (%p186) target = $region47
          $region44: #{static_gnn_forward.1} parent=39 // loop_body
            %v192 = vld [vmem:[%s190] sm:%s183]
            %193 = vst [vmem:[%s191] sm:%s183] %v192
          $region45: #{static_gnn_forward.1} parent=39 // loop_footer
            %s189 = sadd.s32 1, %s185
          $region46: #{static_gnn_forward.1} parent=39 // loop_footer_branch
            %184 = sbr.rel target = $region42
          $region47: #{static_gnn_forward.1} parent=39 // loop_exit
            _
        $region40: #{static_gnn_forward.1} parent=31 // pred_fallthru
          _
        // Predicated region
        $region63: #{static_gnn_forward.1} parent=31 // pred_check
          _
        $region64: #{static_gnn_forward.1} parent=31 // pred_check_branch
          %229 = sbr.rel (0) target = $region66
        $region65: #{static_gnn_forward.1} parent=31 // pred_region
          %230 = vsyncadd [#allocation5], 1024
        $region66: #{static_gnn_forward.1} parent=31 // pred_fallthru
          _
        %s231 = scalar_lea.sflag [#allocation5], 1
        %p233 = scmp.lt.u32.totalorder 64, 8
        %p234 = pneg %p233
        // Predicated region
        $region67: #{static_gnn_forward.1} parent=31 // pred_check
          _
        $region68: #{static_gnn_forward.1} parent=31 // pred_check_branch
          %236 = sbr.rel (%p233) target = $region70
        $region69: #{static_gnn_forward.1} parent=31 // pred_region
          %s252 = sand.u32 64, 7
          %p253 = scmp.eq.s32.totalorder %s252, 0
          // Predicated region
          $region82: #{static_gnn_forward.1} parent=69 // pred_check
            %p254 = pneg %p253
          $region83: #{static_gnn_forward.1} parent=69 // pred_check_branch
            %256 = sbr.rel (%p254) target = $region85
          $region84: #{static_gnn_forward.1} parent=69 // pred_region
            loop: start=0, step=1, limit=1
            $region86: #{static_gnn_forward.1} parent=84 // loop_pre_header
              _
            $region87: #{static_gnn_forward.1} parent=84 // loop_header
              %s258 = sphi 0, %s262
              %p259 = scmp.ge.s32.totalorder %s258, 1
              %s263 = sphi %s1, %s1
              %s264 = sphi [#allocation2], [#allocation2]
            $region88: #{static_gnn_forward.1} parent=84 // loop_header_branch
              %261 = sbr.rel (%p259) target = $region92
            $region89: #{static_gnn_forward.1} parent=84 // loop_body
              %v265 = vld [vmem:[%s263] sm:$0xff]
              %266 = vst [vmem:[%s264] sm:$0xff] %v265
              %v267 = vld [vmem:[%s263 + $0x8] sm:$0xff]
              %268 = vst [vmem:[%s264 + $0x8] sm:$0xff] %v267
              %v269 = vld [vmem:[%s263 + $0x10] sm:$0xff]
              %270 = vst [vmem:[%s264 + $0x10] sm:$0xff] %v269
              %v271 = vld [vmem:[%s263 + $0x18] sm:$0xff]
              %272 = vst [vmem:[%s264 + $0x18] sm:$0xff] %v271
              %v273 = vld [vmem:[%s263 + $0x20] sm:$0xff]
              %274 = vst [vmem:[%s264 + $0x20] sm:$0xff] %v273
              %v275 = vld [vmem:[%s263 + $0x28] sm:$0xff]
              %276 = vst [vmem:[%s264 + $0x28] sm:$0xff] %v275
              %v277 = vld [vmem:[%s263 + $0x30] sm:$0xff]
              %278 = vst [vmem:[%s264 + $0x30] sm:$0xff] %v277
              %v279 = vld [vmem:[%s263 + $0x38] sm:$0xff]
              %280 = vst [vmem:[%s264 + $0x38] sm:$0xff] %v279
            $region90: #{static_gnn_forward.1} parent=84 // loop_footer
              %s262 = sadd.s32 1, %s258
            $region91: #{static_gnn_forward.1} parent=84 // loop_footer_branch
              %257 = sbr.rel target = $region87
            $region92: #{static_gnn_forward.1} parent=84 // loop_exit
              _
          $region85: #{static_gnn_forward.1} parent=69 // pred_fallthru
            _
          %p281 = pneg %p253
          // Predicated region
          $region93: #{static_gnn_forward.1} parent=69 // pred_check
            _
          $region94: #{static_gnn_forward.1} parent=69 // pred_check_branch
            %283 = sbr.rel (%p253) target = $region96
          $region95: #{static_gnn_forward.1} parent=69 // pred_region
            %s284 = sand.u32 64, 7
          $region96: #{static_gnn_forward.1} parent=69 // pred_fallthru
            _
        $region70: #{static_gnn_forward.1} parent=31 // pred_fallthru
          _
        // Predicated region
        $region71: #{static_gnn_forward.1} parent=31 // pred_check
          %p237 = pneg %p233
        $region72: #{static_gnn_forward.1} parent=31 // pred_check_branch
          %239 = sbr.rel (%p237) target = $region74
        $region73: #{static_gnn_forward.1} parent=31 // pred_region
          %s240 = sshll.u32 1, 64
          %s241 = ssub.s32 %s240, 1
          loop: start=0, step=1, limit=1
          $region75: #{static_gnn_forward.1} parent=73 // loop_pre_header
            _
          $region76: #{static_gnn_forward.1} parent=73 // loop_header
            %s243 = sphi 0, %s247
            %p244 = scmp.ge.s32.totalorder %s243, 1
            %s248 = sphi %s1, %s1
            %s249 = sphi [#allocation2], [#allocation2]
          $region77: #{static_gnn_forward.1} parent=73 // loop_header_branch
            %246 = sbr.rel (%p244) target = $region81
          $region78: #{static_gnn_forward.1} parent=73 // loop_body
            %v250 = vld [vmem:[%s248] sm:%s241]
            %251 = vst [vmem:[%s249] sm:%s241] %v250
          $region79: #{static_gnn_forward.1} parent=73 // loop_footer
            %s247 = sadd.s32 1, %s243
          $region80: #{static_gnn_forward.1} parent=73 // loop_footer_branch
            %242 = sbr.rel target = $region76
          $region81: #{static_gnn_forward.1} parent=73 // loop_exit
            _
        $region74: #{static_gnn_forward.1} parent=31 // pred_fallthru
          _
        // Predicated region
        $region97: #{static_gnn_forward.1} parent=31 // pred_check
          _
        $region98: #{static_gnn_forward.1} parent=31 // pred_check_branch
          %287 = sbr.rel (0) target = $region100
        $region99: #{static_gnn_forward.1} parent=31 // pred_region
          %288 = vsyncadd %s231, 1024
        $region100: #{static_gnn_forward.1} parent=31 // pred_fallthru
          _
        %s289 = smul.u32 4, 1
        %s290 = smul.u32 %s289, 16
        %s291 = smul.u32 %s290, 1
        %s292 = sshll.u32 %s291, 4
        %293 = dma.done %s231, %s292
        %s294 = sshll.u32 %s291, 4
        %295 = dma.done [#allocation5], %s294
      $region32: #{static_gnn_forward.1} parent=27 // pred_fallthru
        _
      // Predicated region
      $region101: #{static_gnn_forward.1} parent=27 // pred_check
        %p296 = pneg %p166
      $region102: #{static_gnn_forward.1} parent=27 // pred_check_branch
        %298 = sbr.rel (%p296) target = $region104
      $region103: #{static_gnn_forward.1} parent=27 // pred_region
        %s299 = smul.u32 %s22, 16
        %s300 = smul.addr %s299, 4
        %s301 = scalar_lea.vmem %s4, %s300
        %v302 = vld [vmem:[%s301] sm:$0xf]
        %v303 = vld [vmem:[%s301 + $0x4] sm:$0xf]
        %v304 = vld [vmem:[%s301 + $0x8] sm:$0xf]
        %v305 = vld [vmem:[%s301 + $0xc] sm:$0xf]
        %v306 = vld [vmem:[%s301 + $0x10] sm:$0xf]
        %v307 = vld [vmem:[%s301 + $0x14] sm:$0xf]
        %v308 = vld [vmem:[%s301 + $0x18] sm:$0xf]
        %v309 = vld [vmem:[%s301 + $0x1c] sm:$0xf]
        %v310 = vld [vmem:[%s301 + $0x20] sm:$0xf]
        %v311 = vld [vmem:[%s301 + $0x24] sm:$0xf]
        %v312 = vld [vmem:[%s301 + $0x28] sm:$0xf]
        %v313 = vld [vmem:[%s301 + $0x2c] sm:$0xf]
        %v314 = vld [vmem:[%s301 + $0x30] sm:$0xf]
        %v315 = vld [vmem:[%s301 + $0x34] sm:$0xf]
        %v316 = vld [vmem:[%s301 + $0x38] sm:$0xf]
        %v317 = vld [vmem:[%s301 + $0x3c] sm:$0xf]
        %v318 = vld [vmem:[%s160] sm:$0xf]
        %v319 = vld [vmem:[%s160 + $0x4] sm:$0xf]
        %v320 = vld [vmem:[%s160 + $0x8] sm:$0xf]
        %v321 = vld [vmem:[%s160 + $0xc] sm:$0xf]
        %v322 = vld [vmem:[%s160 + $0x10] sm:$0xf]
        %v323 = vld [vmem:[%s160 + $0x14] sm:$0xf]
        %v324 = vld [vmem:[%s160 + $0x18] sm:$0xf]
        %v325 = vld [vmem:[%s160 + $0x1c] sm:$0xf]
        %v326 = vld [vmem:[%s160 + $0x20] sm:$0xf]
        %v327 = vld [vmem:[%s160 + $0x24] sm:$0xf]
        %v328 = vld [vmem:[%s160 + $0x28] sm:$0xf]
        %v329 = vld [vmem:[%s160 + $0x2c] sm:$0xf]
        %v330 = vld [vmem:[%s160 + $0x30] sm:$0xf]
        %v331 = vld [vmem:[%s160 + $0x34] sm:$0xf]
        %v332 = vld [vmem:[%s160 + $0x38] sm:$0xf]
        %v333 = vld [vmem:[%s160 + $0x3c] sm:$0xf]
        %v350 = vunpack.c.l.b16 %v302
        %v351 = vunpack.c.l.b16 %v303
        %v352 = vunpack.c.l.b16 %v304
        %v353 = vunpack.c.l.b16 %v305
        %v354 = vunpack.c.l.b16 %v306
        %v355 = vunpack.c.l.b16 %v307
        %v356 = vunpack.c.l.b16 %v308
        %v357 = vunpack.c.l.b16 %v309
        %v358 = vunpack.c.l.b16 %v310
        %v359 = vunpack.c.l.b16 %v311
        %v360 = vunpack.c.l.b16 %v312
        %v361 = vunpack.c.l.b16 %v313
        %v362 = vunpack.c.l.b16 %v314
        %v363 = vunpack.c.l.b16 %v315
        %v364 = vunpack.c.l.b16 %v316
        %v365 = vunpack.c.l.b16 %v317
        %v366 = vpack.c.b16 %v351, %v350
        %v367 = vpack.c.b16 %v353, %v352
        %v368 = vpack.c.b16 %v355, %v354
        %v369 = vpack.c.b16 %v357, %v356
        %v370 = vpack.c.b16 %v359, %v358
        %v371 = vpack.c.b16 %v361, %v360
        %v372 = vpack.c.b16 %v363, %v362
        %v373 = vpack.c.b16 %v365, %v364
        %v398 = vunpack.c.l.b16 %v318
        %v399 = vunpack.c.l.b16 %v319
        %v400 = vunpack.c.l.b16 %v320
        %v401 = vunpack.c.l.b16 %v321
        %v402 = vunpack.c.l.b16 %v322
        %v403 = vunpack.c.l.b16 %v323
        %v404 = vunpack.c.l.b16 %v324
        %v405 = vunpack.c.l.b16 %v325
        %v406 = vunpack.c.l.b16 %v326
        %v407 = vunpack.c.l.b16 %v327
        %v408 = vunpack.c.l.b16 %v328
        %v409 = vunpack.c.l.b16 %v329
        %v410 = vunpack.c.l.b16 %v330
        %v411 = vunpack.c.l.b16 %v331
        %v412 = vunpack.c.l.b16 %v332
        %v413 = vunpack.c.l.b16 %v333
        %v414 = vpack.c.b16 %v399, %v398
        %v415 = vpack.c.b16 %v401, %v400
        %v416 = vpack.c.b16 %v403, %v402
        %v417 = vpack.c.b16 %v405, %v404
        %v418 = vpack.c.b16 %v407, %v406
        %v419 = vpack.c.b16 %v409, %v408
        %v420 = vpack.c.b16 %v411, %v410
        %v421 = vpack.c.b16 %v413, %v412
        %430 = vmatprep.subr.bf16.mxu0 0
        %431 = vmatpush1.bf16.msra.mxu0 %v421
        %432 = vmatprep.subr.bf16.mxu0 0
        %433 = vmatpush1.bf16.msra.mxu0 %v420
        %434 = vmatprep.subr.bf16.mxu0 0
        %435 = vmatpush1.bf16.msra.mxu0 %v419
        %436 = vmatprep.subr.bf16.mxu0 0
        %437 = vmatpush1.bf16.msra.mxu0 %v418
        %438 = vmatprep.subr.bf16.mxu0 0
        %439 = vmatpush1.bf16.msra.mxu0 %v417
        %440 = vmatprep.subr.bf16.mxu0 0
        %441 = vmatpush1.bf16.msra.mxu0 %v416
        %442 = vmatprep.subr.bf16.mxu0 0
        %443 = vmatpush1.bf16.msra.mxu0 %v415
        %444 = vmatprep.subr.bf16.mxu0 0
        %445 = vmatpush1.bf16.msra.mxu0 %v414
        %446 = vmatprep.subr.bf16.mxu0 0
        %447 = vmatpush2.bf16.msra.mxu0 0
        %448 = vmatprep.subr.bf16.mxu0 0
        %449 = vmatpush2.bf16.msra.mxu0 0
        %450 = vmatprep.subr.bf16.mxu0 0
        %451 = vmatpush2.bf16.msra.mxu0 0
        %452 = vmatprep.subr.bf16.mxu0 0
        %453 = vmatpush2.bf16.msra.mxu0 0
        %454 = vmatprep.subr.bf16.mxu0 0
        %455 = vmatpush2.bf16.msra.mxu0 0
        %456 = vmatprep.subr.bf16.mxu0 0
        %457 = vmatpush2.bf16.msra.mxu0 0
        %458 = vmatprep.subr.bf16.mxu0 0
        %459 = vmatpush2.bf16.msra.mxu0 0
        %460 = vmatprep.subr.bf16.mxu0 0
        %461 = vmatpush2.bf16.msra.mxu0 0
        %462 = vmatprep.mubr.bf16.mxu0 0
        %463 = vmatmul.mubr.bf16.gmra.mxu0 %v366
        %v464 = vpop.f32.mrf.mxu0
        %v465 = vadd.f32 0.0, %v464
        %v466 = vpop.f32.mrf.mxu0
        %v467 = vpop.f32.mrf.mxu0
        %v468 = vadd.f32 0.0, %v467
        %v469 = vpop.f32.mrf.mxu0
        %470 = vmatprep.mubr.bf16.mxu0 0
        %471 = vmatmul.mubr.bf16.gmra.mxu0 %v367
        %v472 = vpop.f32.mrf.mxu0
        %v473 = vadd.f32 0.0, %v472
        %v474 = vpop.f32.mrf.mxu0
        %v475 = vpop.f32.mrf.mxu0
        %v476 = vadd.f32 0.0, %v475
        %v477 = vpop.f32.mrf.mxu0
        %478 = vmatprep.mubr.bf16.mxu0 0
        %479 = vmatmul.mubr.bf16.gmra.mxu0 %v368
        %v480 = vpop.f32.mrf.mxu0
        %v481 = vadd.f32 0.0, %v480
        %v482 = vpop.f32.mrf.mxu0
        %v483 = vpop.f32.mrf.mxu0
        %v484 = vadd.f32 0.0, %v483
        %v485 = vpop.f32.mrf.mxu0
        %486 = vmatprep.mubr.bf16.mxu0 0
        %487 = vmatmul.mubr.bf16.gmra.mxu0 %v369
        %v488 = vpop.f32.mrf.mxu0
        %v489 = vadd.f32 0.0, %v488
        %v490 = vpop.f32.mrf.mxu0
        %v491 = vpop.f32.mrf.mxu0
        %v492 = vadd.f32 0.0, %v491
        %v493 = vpop.f32.mrf.mxu0
        %494 = vmatprep.mubr.bf16.mxu0 0
        %495 = vmatmul.mubr.bf16.gmra.mxu0 %v370
        %v496 = vpop.f32.mrf.mxu0
        %v497 = vadd.f32 0.0, %v496
        %v498 = vpop.f32.mrf.mxu0
        %v499 = vpop.f32.mrf.mxu0
        %v500 = vadd.f32 0.0, %v499
        %v501 = vpop.f32.mrf.mxu0
        %502 = vmatprep.mubr.bf16.mxu0 0
        %503 = vmatmul.mubr.bf16.gmra.mxu0 %v371
        %v504 = vpop.f32.mrf.mxu0
        %v505 = vadd.f32 0.0, %v504
        %v506 = vpop.f32.mrf.mxu0
        %v507 = vpop.f32.mrf.mxu0
        %v508 = vadd.f32 0.0, %v507
        %v509 = vpop.f32.mrf.mxu0
        %510 = vmatprep.mubr.bf16.mxu0 0
        %511 = vmatmul.mubr.bf16.gmra.mxu0 %v372
        %v512 = vpop.f32.mrf.mxu0
        %v513 = vadd.f32 0.0, %v512
        %v514 = vpop.f32.mrf.mxu0
        %v515 = vpop.f32.mrf.mxu0
        %v516 = vadd.f32 0.0, %v515
        %v517 = vpop.f32.mrf.mxu0
        %518 = vmatprep.mubr.bf16.mxu0 0
        %519 = vmatmul.mubr.bf16.gmra.mxu0 %v373
        %v520 = vpop.f32.mrf.mxu0
        %v521 = vadd.f32 0.0, %v520
        %v522 = vpop.f32.mrf.mxu0
        %v523 = vpop.f32.mrf.mxu0
        %v524 = vadd.f32 0.0, %v523
        %v525 = vpop.f32.mrf.mxu0
        %526 = vdwg.mxu0
        %v527 = vpack.c.bf16 %v468, %v465
        %v528 = vpack.c.bf16 %v476, %v473
        %v529 = vpack.c.bf16 %v484, %v481
        %v530 = vpack.c.bf16 %v492, %v489
        %v531 = vpack.c.bf16 %v500, %v497
        %v532 = vpack.c.bf16 %v508, %v505
        %v533 = vpack.c.bf16 %v516, %v513
        %v534 = vpack.c.bf16 %v524, %v521
        %v543 = vunpack.c.l.b16 %v527
        %v544 = vunpack.c.h.b16 %v527
        %v545 = vunpack.c.l.b16 %v528
        %v546 = vunpack.c.h.b16 %v528
        %v547 = vunpack.c.l.b16 %v529
        %v548 = vunpack.c.h.b16 %v529
        %v549 = vunpack.c.l.b16 %v530
        %v550 = vunpack.c.h.b16 %v530
        %v551 = vunpack.c.l.b16 %v531
        %v552 = vunpack.c.h.b16 %v531
        %v553 = vunpack.c.l.b16 %v532
        %v554 = vunpack.c.h.b16 %v532
        %v555 = vunpack.c.l.b16 %v533
        %v556 = vunpack.c.h.b16 %v533
        %v557 = vunpack.c.l.b16 %v534
        %v558 = vunpack.c.h.b16 %v534
        %v559 = vpack.c.b16 %v543, %v543
        %v560 = vpack.c.b16 %v544, %v544
        %v561 = vpack.c.b16 %v545, %v545
        %v562 = vpack.c.b16 %v546, %v546
        %v563 = vpack.c.b16 %v547, %v547
        %v564 = vpack.c.b16 %v548, %v548
        %v565 = vpack.c.b16 %v549, %v549
        %v566 = vpack.c.b16 %v550, %v550
        %v567 = vpack.c.b16 %v551, %v551
        %v568 = vpack.c.b16 %v552, %v552
        %v569 = vpack.c.b16 %v553, %v553
        %v570 = vpack.c.b16 %v554, %v554
        %v571 = vpack.c.b16 %v555, %v555
        %v572 = vpack.c.b16 %v556, %v556
        %v573 = vpack.c.b16 %v557, %v557
        %v574 = vpack.c.b16 %v558, %v558
        %s591 = smul.addr %s299, 4
        %s592 = scalar_lea.vmem [#allocation3], %s591
        %593 = vst [vmem:[%s592] sm:$0xf] %v559
        %594 = vst [vmem:[%s592 + $0x4] sm:$0xf] %v560
        %595 = vst [vmem:[%s592 + $0x8] sm:$0xf] %v561
        %596 = vst [vmem:[%s592 + $0xc] sm:$0xf] %v562
        %597 = vst [vmem:[%s592 + $0x10] sm:$0xf] %v563
        %598 = vst [vmem:[%s592 + $0x14] sm:$0xf] %v564
        %599 = vst [vmem:[%s592 + $0x18] sm:$0xf] %v565
        %600 = vst [vmem:[%s592 + $0x1c] sm:$0xf] %v566
        %601 = vst [vmem:[%s592 + $0x20] sm:$0xf] %v567
        %602 = vst [vmem:[%s592 + $0x24] sm:$0xf] %v568
        %603 = vst [vmem:[%s592 + $0x28] sm:$0xf] %v569
        %604 = vst [vmem:[%s592 + $0x2c] sm:$0xf] %v570
        %605 = vst [vmem:[%s592 + $0x30] sm:$0xf] %v571
        %606 = vst [vmem:[%s592 + $0x34] sm:$0xf] %v572
        %607 = vst [vmem:[%s592 + $0x38] sm:$0xf] %v573
        %608 = vst [vmem:[%s592 + $0x3c] sm:$0xf] %v574
      $region104: #{static_gnn_forward.1} parent=27 // pred_fallthru
        _
      // Predicated region
      $region105: #{static_gnn_forward.1} parent=27 // pred_check
        %p609 = pneg %p167
      $region106: #{static_gnn_forward.1} parent=27 // pred_check_branch
        %611 = sbr.rel (%p609) target = $region108
      $region107: #{static_gnn_forward.1} parent=27 // pred_region
        %612 = vst [vmem:[#allocation4] sm:$0xff] 0.0
        %613 = vst [vmem:[#allocation4 + $0x8] sm:$0xff] 0.0
        %614 = vst [vmem:[#allocation4 + $0x10] sm:$0xff] 0.0
        %615 = vst [vmem:[#allocation4 + $0x18] sm:$0xff] 0.0
        %616 = vst [vmem:[#allocation4 + $0x20] sm:$0xff] 0.0
        %617 = vst [vmem:[#allocation4 + $0x28] sm:$0xff] 0.0
        %618 = vst [vmem:[#allocation4 + $0x30] sm:$0xff] 0.0
        %619 = vst [vmem:[#allocation4 + $0x38] sm:$0xff] 0.0
        %620 = vst [vmem:[#allocation4 + $0x40] sm:$0xff] 0.0
        %621 = vst [vmem:[#allocation4 + $0x48] sm:$0xff] 0.0
        %622 = vst [vmem:[#allocation4 + $0x50] sm:$0xff] 0.0
        %623 = vst [vmem:[#allocation4 + $0x58] sm:$0xff] 0.0
        %624 = vst [vmem:[#allocation4 + $0x60] sm:$0xff] 0.0
        %625 = vst [vmem:[#allocation4 + $0x68] sm:$0xff] 0.0
        %626 = vst [vmem:[#allocation4 + $0x70] sm:$0xff] 0.0
        %627 = vst [vmem:[#allocation4 + $0x78] sm:$0xff] 0.0
      $region108: #{static_gnn_forward.1} parent=27 // pred_fallthru
        _
      %s628 = sadd.s32 %s21, %s22
      %s629 = smul.u32 %s628, 16
      %s630 = smul.addr %s629, 4
      %s631 = scalar_lea.vmem [#allocation2], %s630
      %v632 = vld [vmem:[%s631] sm:$0xf]
      %v633 = vld [vmem:[%s631 + $0x4] sm:$0xf]
      %v634 = vld [vmem:[%s631 + $0x8] sm:$0xf]
      %v635 = vld [vmem:[%s631 + $0xc] sm:$0xf]
      %v636 = vld [vmem:[%s631 + $0x10] sm:$0xf]
      %v637 = vld [vmem:[%s631 + $0x14] sm:$0xf]
      %v638 = vld [vmem:[%s631 + $0x18] sm:$0xf]
      %v639 = vld [vmem:[%s631 + $0x1c] sm:$0xf]
      %v640 = vld [vmem:[%s631 + $0x20] sm:$0xf]
      %v641 = vld [vmem:[%s631 + $0x24] sm:$0xf]
      %v642 = vld [vmem:[%s631 + $0x28] sm:$0xf]
      %v643 = vld [vmem:[%s631 + $0x2c] sm:$0xf]
      %v644 = vld [vmem:[%s631 + $0x30] sm:$0xf]
      %v645 = vld [vmem:[%s631 + $0x34] sm:$0xf]
      %v646 = vld [vmem:[%s631 + $0x38] sm:$0xf]
      %v647 = vld [vmem:[%s631 + $0x3c] sm:$0xf]
      %v648 = vld [vmem:[#allocation4] sm:$0xff]
      %v649 = vld [vmem:[#allocation4 + $0x8] sm:$0xff]
      %v650 = vld [vmem:[#allocation4 + $0x10] sm:$0xff]
      %v651 = vld [vmem:[#allocation4 + $0x18] sm:$0xff]
      %v652 = vld [vmem:[#allocation4 + $0x20] sm:$0xff]
      %v653 = vld [vmem:[#allocation4 + $0x28] sm:$0xff]
      %v654 = vld [vmem:[#allocation4 + $0x30] sm:$0xff]
      %v655 = vld [vmem:[#allocation4 + $0x38] sm:$0xff]
      %v656 = vld [vmem:[#allocation4 + $0x40] sm:$0xff]
      %v657 = vld [vmem:[#allocation4 + $0x48] sm:$0xff]
      %v658 = vld [vmem:[#allocation4 + $0x50] sm:$0xff]
      %v659 = vld [vmem:[#allocation4 + $0x58] sm:$0xff]
      %v660 = vld [vmem:[#allocation4 + $0x60] sm:$0xff]
      %v661 = vld [vmem:[#allocation4 + $0x68] sm:$0xff]
      %v662 = vld [vmem:[#allocation4 + $0x70] sm:$0xff]
      %v663 = vld [vmem:[#allocation4 + $0x78] sm:$0xff]
      %s664 = smul.u32 %s22, 16
      %s665 = smul.addr %s664, 4
      %s666 = scalar_lea.vmem [#allocation3], %s665
      %v667 = vld [vmem:[%s666] sm:$0xf]
      %v668 = vld [vmem:[%s666 + $0x4] sm:$0xf]
      %v669 = vld [vmem:[%s666 + $0x8] sm:$0xf]
      %v670 = vld [vmem:[%s666 + $0xc] sm:$0xf]
      %v671 = vld [vmem:[%s666 + $0x10] sm:$0xf]
      %v672 = vld [vmem:[%s666 + $0x14] sm:$0xf]
      %v673 = vld [vmem:[%s666 + $0x18] sm:$0xf]
      %v674 = vld [vmem:[%s666 + $0x1c] sm:$0xf]
      %v675 = vld [vmem:[%s666 + $0x20] sm:$0xf]
      %v676 = vld [vmem:[%s666 + $0x24] sm:$0xf]
      %v677 = vld [vmem:[%s666 + $0x28] sm:$0xf]
      %v678 = vld [vmem:[%s666 + $0x2c] sm:$0xf]
      %v679 = vld [vmem:[%s666 + $0x30] sm:$0xf]
      %v680 = vld [vmem:[%s666 + $0x34] sm:$0xf]
      %v681 = vld [vmem:[%s666 + $0x38] sm:$0xf]
      %v682 = vld [vmem:[%s666 + $0x3c] sm:$0xf]
      %v699 = vunpack.c.l.b16 %v632
      %v700 = vunpack.c.l.b16 %v633
      %v701 = vunpack.c.l.b16 %v634
      %v702 = vunpack.c.l.b16 %v635
      %v703 = vunpack.c.l.b16 %v636
      %v704 = vunpack.c.l.b16 %v637
      %v705 = vunpack.c.l.b16 %v638
      %v706 = vunpack.c.l.b16 %v639
      %v707 = vunpack.c.l.b16 %v640
      %v708 = vunpack.c.l.b16 %v641
      %v709 = vunpack.c.l.b16 %v642
      %v710 = vunpack.c.l.b16 %v643
      %v711 = vunpack.c.l.b16 %v644
      %v712 = vunpack.c.l.b16 %v645
      %v713 = vunpack.c.l.b16 %v646
      %v714 = vunpack.c.l.b16 %v647
      %v715 = vpack.c.b16 %v700, %v699
      %v716 = vpack.c.b16 %v702, %v701
      %v717 = vpack.c.b16 %v704, %v703
      %v718 = vpack.c.b16 %v706, %v705
      %v719 = vpack.c.b16 %v708, %v707
      %v720 = vpack.c.b16 %v710, %v709
      %v721 = vpack.c.b16 %v712, %v711
      %v722 = vpack.c.b16 %v714, %v713
      %v747 = vunpack.c.l.b16 %v667
      %v748 = vunpack.c.l.b16 %v668
      %v749 = vunpack.c.l.b16 %v669
      %v750 = vunpack.c.l.b16 %v670
      %v751 = vunpack.c.l.b16 %v671
      %v752 = vunpack.c.l.b16 %v672
      %v753 = vunpack.c.l.b16 %v673
      %v754 = vunpack.c.l.b16 %v674
      %v755 = vunpack.c.l.b16 %v675
      %v756 = vunpack.c.l.b16 %v676
      %v757 = vunpack.c.l.b16 %v677
      %v758 = vunpack.c.l.b16 %v678
      %v759 = vunpack.c.l.b16 %v679
      %v760 = vunpack.c.l.b16 %v680
      %v761 = vunpack.c.l.b16 %v681
      %v762 = vunpack.c.l.b16 %v682
      %v763 = vpack.c.b16 %v748, %v747
      %v764 = vpack.c.b16 %v750, %v749
      %v765 = vpack.c.b16 %v752, %v751
      %v766 = vpack.c.b16 %v754, %v753
      %v767 = vpack.c.b16 %v756, %v755
      %v768 = vpack.c.b16 %v758, %v757
      %v769 = vpack.c.b16 %v760, %v759
      %v770 = vpack.c.b16 %v762, %v761
      %779 = vmatprep.subr.bf16.mxu0 0
      %780 = vmatpush1.bf16.msra.mxu0 %v770
      %781 = vmatprep.subr.bf16.mxu0 0
      %782 = vmatpush1.bf16.msra.mxu0 %v769
      %783 = vmatprep.subr.bf16.mxu0 0
      %784 = vmatpush1.bf16.msra.mxu0 %v768
      %785 = vmatprep.subr.bf16.mxu0 0
      %786 = vmatpush1.bf16.msra.mxu0 %v767
      %787 = vmatprep.subr.bf16.mxu0 0
      %788 = vmatpush1.bf16.msra.mxu0 %v766
      %789 = vmatprep.subr.bf16.mxu0 0
      %790 = vmatpush1.bf16.msra.mxu0 %v765
      %791 = vmatprep.subr.bf16.mxu0 0
      %792 = vmatpush1.bf16.msra.mxu0 %v764
      %793 = vmatprep.subr.bf16.mxu0 0
      %794 = vmatpush1.bf16.msra.mxu0 %v763
      %795 = vmatprep.subr.bf16.mxu0 0
      %796 = vmatpush2.bf16.msra.mxu0 0
      %797 = vmatprep.subr.bf16.mxu0 0
      %798 = vmatpush2.bf16.msra.mxu0 0
      %799 = vmatprep.subr.bf16.mxu0 0
      %800 = vmatpush2.bf16.msra.mxu0 0
      %801 = vmatprep.subr.bf16.mxu0 0
      %802 = vmatpush2.bf16.msra.mxu0 0
      %803 = vmatprep.subr.bf16.mxu0 0
      %804 = vmatpush2.bf16.msra.mxu0 0
      %805 = vmatprep.subr.bf16.mxu0 0
      %806 = vmatpush2.bf16.msra.mxu0 0
      %807 = vmatprep.subr.bf16.mxu0 0
      %808 = vmatpush2.bf16.msra.mxu0 0
      %809 = vmatprep.subr.bf16.mxu0 0
      %810 = vmatpush2.bf16.msra.mxu0 0
      %811 = vmatprep.mubr.bf16.mxu0 0
      %812 = vmatmul.mubr.bf16.gmra.mxu0 %v715
      %v813 = vpop.f32.mrf.mxu0
      %v814 = vadd.f32 0.0, %v813
      %v815 = vpop.f32.mrf.mxu0
      %v816 = vpop.f32.mrf.mxu0
      %v817 = vadd.f32 0.0, %v816
      %v818 = vpop.f32.mrf.mxu0
      %819 = vmatprep.mubr.bf16.mxu0 0
      %820 = vmatmul.mubr.bf16.gmra.mxu0 %v716
      %v821 = vpop.f32.mrf.mxu0
      %v822 = vadd.f32 0.0, %v821
      %v823 = vpop.f32.mrf.mxu0
      %v824 = vpop.f32.mrf.mxu0
      %v825 = vadd.f32 0.0, %v824
      %v826 = vpop.f32.mrf.mxu0
      %827 = vmatprep.mubr.bf16.mxu0 0
      %828 = vmatmul.mubr.bf16.gmra.mxu0 %v717
      %v829 = vpop.f32.mrf.mxu0
      %v830 = vadd.f32 0.0, %v829
      %v831 = vpop.f32.mrf.mxu0
      %v832 = vpop.f32.mrf.mxu0
      %v833 = vadd.f32 0.0, %v832
      %v834 = vpop.f32.mrf.mxu0
      %835 = vmatprep.mubr.bf16.mxu0 0
      %836 = vmatmul.mubr.bf16.gmra.mxu0 %v718
      %v837 = vpop.f32.mrf.mxu0
      %v838 = vadd.f32 0.0, %v837
      %v839 = vpop.f32.mrf.mxu0
      %v840 = vpop.f32.mrf.mxu0
      %v841 = vadd.f32 0.0, %v840
      %v842 = vpop.f32.mrf.mxu0
      %843 = vmatprep.mubr.bf16.mxu0 0
      %844 = vmatmul.mubr.bf16.gmra.mxu0 %v719
      %v845 = vpop.f32.mrf.mxu0
      %v846 = vadd.f32 0.0, %v845
      %v847 = vpop.f32.mrf.mxu0
      %v848 = vpop.f32.mrf.mxu0
      %v849 = vadd.f32 0.0, %v848
      %v850 = vpop.f32.mrf.mxu0
      %851 = vmatprep.mubr.bf16.mxu0 0
      %852 = vmatmul.mubr.bf16.gmra.mxu0 %v720
      %v853 = vpop.f32.mrf.mxu0
      %v854 = vadd.f32 0.0, %v853
      %v855 = vpop.f32.mrf.mxu0
      %v856 = vpop.f32.mrf.mxu0
      %v857 = vadd.f32 0.0, %v856
      %v858 = vpop.f32.mrf.mxu0
      %859 = vmatprep.mubr.bf16.mxu0 0
      %860 = vmatmul.mubr.bf16.gmra.mxu0 %v721
      %v861 = vpop.f32.mrf.mxu0
      %v862 = vadd.f32 0.0, %v861
      %v863 = vpop.f32.mrf.mxu0
      %v864 = vpop.f32.mrf.mxu0
      %v865 = vadd.f32 0.0, %v864
      %v866 = vpop.f32.mrf.mxu0
      %867 = vmatprep.mubr.bf16.mxu0 0
      %868 = vmatmul.mubr.bf16.gmra.mxu0 %v722
      %v869 = vpop.f32.mrf.mxu0
      %v870 = vadd.f32 0.0, %v869
      %v871 = vpop.f32.mrf.mxu0
      %v872 = vpop.f32.mrf.mxu0
      %v873 = vadd.f32 0.0, %v872
      %v874 = vpop.f32.mrf.mxu0
      %875 = vdwg.mxu0
      %v876 = vadd.f32 %v648, %v814
      %v877 = vadd.f32 %v649, %v817
      %v878 = vadd.f32 %v650, %v822
      %v879 = vadd.f32 %v651, %v825
      %v880 = vadd.f32 %v652, %v830
      %v881 = vadd.f32 %v653, %v833
      %v882 = vadd.f32 %v654, %v838
      %v883 = vadd.f32 %v655, %v841
      %v884 = vadd.f32 %v656, %v846
      %v885 = vadd.f32 %v657, %v849
      %v886 = vadd.f32 %v658, %v854
      %v887 = vadd.f32 %v659, %v857
      %v888 = vadd.f32 %v660, %v862
      %v889 = vadd.f32 %v661, %v865
      %v890 = vadd.f32 %v662, %v870
      %v891 = vadd.f32 %v663, %v873
      %892 = vst [vmem:[#allocation4] sm:$0xff] %v876
      %893 = vst [vmem:[#allocation4 + $0x8] sm:$0xff] %v877
      %894 = vst [vmem:[#allocation4 + $0x10] sm:$0xff] %v878
      %895 = vst [vmem:[#allocation4 + $0x18] sm:$0xff] %v879
      %896 = vst [vmem:[#allocation4 + $0x20] sm:$0xff] %v880
      %897 = vst [vmem:[#allocation4 + $0x28] sm:$0xff] %v881
      %898 = vst [vmem:[#allocation4 + $0x30] sm:$0xff] %v882
      %899 = vst [vmem:[#allocation4 + $0x38] sm:$0xff] %v883
      %900 = vst [vmem:[#allocation4 + $0x40] sm:$0xff] %v884
      %901 = vst [vmem:[#allocation4 + $0x48] sm:$0xff] %v885
      %902 = vst [vmem:[#allocation4 + $0x50] sm:$0xff] %v886
      %903 = vst [vmem:[#allocation4 + $0x58] sm:$0xff] %v887
      %904 = vst [vmem:[#allocation4 + $0x60] sm:$0xff] %v888
      %905 = vst [vmem:[#allocation4 + $0x68] sm:$0xff] %v889
      %906 = vst [vmem:[#allocation4 + $0x70] sm:$0xff] %v890
      %907 = vst [vmem:[#allocation4 + $0x78] sm:$0xff] %v891
      // Predicated region
      $region109: #{static_gnn_forward.1} parent=27 // pred_check
        %p908 = pneg %p167
      $region110: #{static_gnn_forward.1} parent=27 // pred_check_branch
        %910 = sbr.rel (%p908) target = $region112
      $region111: #{static_gnn_forward.1} parent=27 // pred_region
        %v911 = vld [vmem:[#allocation4] sm:$0xff]
        %v912 = vld [vmem:[#allocation4 + $0x8] sm:$0xff]
        %v913 = vld [vmem:[#allocation4 + $0x10] sm:$0xff]
        %v914 = vld [vmem:[#allocation4 + $0x18] sm:$0xff]
        %v915 = vld [vmem:[#allocation4 + $0x20] sm:$0xff]
        %v916 = vld [vmem:[#allocation4 + $0x28] sm:$0xff]
        %v917 = vld [vmem:[#allocation4 + $0x30] sm:$0xff]
        %v918 = vld [vmem:[#allocation4 + $0x38] sm:$0xff]
        %v919 = vld [vmem:[#allocation4 + $0x40] sm:$0xff]
        %v920 = vld [vmem:[#allocation4 + $0x48] sm:$0xff]
        %v921 = vld [vmem:[#allocation4 + $0x50] sm:$0xff]
        %v922 = vld [vmem:[#allocation4 + $0x58] sm:$0xff]
        %v923 = vld [vmem:[#allocation4 + $0x60] sm:$0xff]
        %v924 = vld [vmem:[#allocation4 + $0x68] sm:$0xff]
        %v925 = vld [vmem:[#allocation4 + $0x70] sm:$0xff]
        %v926 = vld [vmem:[#allocation4 + $0x78] sm:$0xff]
        %v927 = vld [vmem:[%s163] sm:$0x1]
        %v929 = vlaneseq
        %v930 = vshrl.u32 %v929, 7
        %v931 = vsub.s32 0, %v930
        %v932 = vrot.slane %v927, %v931
        %v934 = vadd.f32 %v911, %v932
        %v935 = vadd.f32 %v912, %v932
        %v936 = vadd.f32 %v913, %v932
        %v937 = vadd.f32 %v914, %v932
        %v938 = vadd.f32 %v915, %v932
        %v939 = vadd.f32 %v916, %v932
        %v940 = vadd.f32 %v917, %v932
        %v941 = vadd.f32 %v918, %v932
        %v942 = vadd.f32 %v919, %v932
        %v943 = vadd.f32 %v920, %v932
        %v944 = vadd.f32 %v921, %v932
        %v945 = vadd.f32 %v922, %v932
        %v946 = vadd.f32 %v923, %v932
        %v947 = vadd.f32 %v924, %v932
        %v948 = vadd.f32 %v925, %v932
        %v949 = vadd.f32 %v926, %v932
        %v950 = vmax.f32 %v934, 0.0
        %v951 = vmax.f32 %v935, 0.0
        %v952 = vmax.f32 %v936, 0.0
        %v953 = vmax.f32 %v937, 0.0
        %v954 = vmax.f32 %v938, 0.0
        %v955 = vmax.f32 %v939, 0.0
        %v956 = vmax.f32 %v940, 0.0
        %v957 = vmax.f32 %v941, 0.0
        %v958 = vmax.f32 %v942, 0.0
        %v959 = vmax.f32 %v943, 0.0
        %v960 = vmax.f32 %v944, 0.0
        %v961 = vmax.f32 %v945, 0.0
        %v962 = vmax.f32 %v946, 0.0
        %v963 = vmax.f32 %v947, 0.0
        %v964 = vmax.f32 %v948, 0.0
        %v965 = vmax.f32 %v949, 0.0
        %v966 = vpack.c.bf16 %v951, %v950
        %v967 = vpack.c.bf16 %v953, %v952
        %v968 = vpack.c.bf16 %v955, %v954
        %v969 = vpack.c.bf16 %v957, %v956
        %v970 = vpack.c.bf16 %v959, %v958
        %v971 = vpack.c.bf16 %v961, %v960
        %v972 = vpack.c.bf16 %v963, %v962
        %v973 = vpack.c.bf16 %v965, %v964
        %v982 = vunpack.c.l.b16 %v966
        %v983 = vunpack.c.h.b16 %v966
        %v984 = vunpack.c.l.b16 %v967
        %v985 = vunpack.c.h.b16 %v967
        %v986 = vunpack.c.l.b16 %v968
        %v987 = vunpack.c.h.b16 %v968
        %v988 = vunpack.c.l.b16 %v969
        %v989 = vunpack.c.h.b16 %v969
        %v990 = vunpack.c.l.b16 %v970
        %v991 = vunpack.c.h.b16 %v970
        %v992 = vunpack.c.l.b16 %v971
        %v993 = vunpack.c.h.b16 %v971
        %v994 = vunpack.c.l.b16 %v972
        %v995 = vunpack.c.h.b16 %v972
        %v996 = vunpack.c.l.b16 %v973
        %v997 = vunpack.c.h.b16 %v973
        %v998 = vpack.c.b16 %v982, %v982
        %v999 = vpack.c.b16 %v983, %v983
        %v1000 = vpack.c.b16 %v984, %v984
        %v1001 = vpack.c.b16 %v985, %v985
        %v1002 = vpack.c.b16 %v986, %v986
        %v1003 = vpack.c.b16 %v987, %v987
        %v1004 = vpack.c.b16 %v988, %v988
        %v1005 = vpack.c.b16 %v989, %v989
        %v1006 = vpack.c.b16 %v990, %v990
        %v1007 = vpack.c.b16 %v991, %v991
        %v1008 = vpack.c.b16 %v992, %v992
        %v1009 = vpack.c.b16 %v993, %v993
        %v1010 = vpack.c.b16 %v994, %v994
        %v1011 = vpack.c.b16 %v995, %v995
        %v1012 = vpack.c.b16 %v996, %v996
        %v1013 = vpack.c.b16 %v997, %v997
        %s1030 = smul.u32 %s21, 16
        %s1031 = smul.addr %s1030, 4
        %s1032 = scalar_lea.vmem %s4, %s1031
        %1033 = vst [vmem:[%s1032] sm:$0xf] %v998
        %1034 = vst [vmem:[%s1032 + $0x4] sm:$0xf] %v999
        %1035 = vst [vmem:[%s1032 + $0x8] sm:$0xf] %v1000
        %1036 = vst [vmem:[%s1032 + $0xc] sm:$0xf] %v1001
        %1037 = vst [vmem:[%s1032 + $0x10] sm:$0xf] %v1002
        %1038 = vst [vmem:[%s1032 + $0x14] sm:$0xf] %v1003
        %1039 = vst [vmem:[%s1032 + $0x18] sm:$0xf] %v1004
        %1040 = vst [vmem:[%s1032 + $0x1c] sm:$0xf] %v1005
        %1041 = vst [vmem:[%s1032 + $0x20] sm:$0xf] %v1006
        %1042 = vst [vmem:[%s1032 + $0x24] sm:$0xf] %v1007
        %1043 = vst [vmem:[%s1032 + $0x28] sm:$0xf] %v1008
        %1044 = vst [vmem:[%s1032 + $0x2c] sm:$0xf] %v1009
        %1045 = vst [vmem:[%s1032 + $0x30] sm:$0xf] %v1010
        %1046 = vst [vmem:[%s1032 + $0x34] sm:$0xf] %v1011
        %1047 = vst [vmem:[%s1032 + $0x38] sm:$0xf] %v1012
        %1048 = vst [vmem:[%s1032 + $0x3c] sm:$0xf] %v1013
      $region112: #{static_gnn_forward.1} parent=27 // pred_fallthru
        _
      // Predicated region
      $region113: #{static_gnn_forward.1} parent=27 // pred_check
        %p1049 = pneg %p99
      $region114: #{static_gnn_forward.1} parent=27 // pred_check_branch
        %1051 = sbr.rel (%p1049) target = $region116
      $region115: #{static_gnn_forward.1} parent=27 // pred_region
        _
      $region116: #{static_gnn_forward.1} parent=27 // pred_fallthru
        _
      // Predicated region
      $region117: #{static_gnn_forward.1} parent=27 // pred_check
        %p1052 = pneg %p99
      $region118: #{static_gnn_forward.1} parent=27 // pred_check_branch
        %1054 = sbr.rel (%p1052) target = $region120
      $region119: #{static_gnn_forward.1} parent=27 // pred_region
        _
      $region120: #{static_gnn_forward.1} parent=27 // pred_fallthru
        _
    $region28: #{static_gnn_forward.1} parent=5 // pred_fallthru
      _
    %p1055 = scmp.le.s32.totalorder 2, %s10
    // Predicated region
    $region121: #{static_gnn_forward.1} parent=5 // pred_check
      %p1056 = pneg %p1055
    $region122: #{static_gnn_forward.1} parent=5 // pred_check_branch
      %1058 = sbr.rel (%p1056) target = $region124
    $region123: #{static_gnn_forward.1} parent=5 // pred_region
      %s1059 = ssub.s32 %s10, 2
    $region124: #{static_gnn_forward.1} parent=5 // pred_fallthru
      _
  $region6: #{static_gnn_forward.1} parent=0 // loop_footer
    %s14 = sadd.s32 1, %s10
  $region7: #{static_gnn_forward.1} parent=0 // loop_footer_branch
    %9 = sbr.rel target = $region3
  $region8: #{static_gnn_forward.1} parent=0 // loop_exit
    _
  %1060 = vsyncmov [#allocation5]
  %s1061 = vpop.sfrf %1060
  %p1062 = scmp.eq.s32.totalorder %s1061, 0
  %p1063 = pneg %p1062
  %1065 = shalt.err (%p1063)
  %s1066 = scalar_lea.sflag [#allocation5], 1
  %1067 = vsyncmov %s1066
  %s1068 = vpop.sfrf %1067
  %p1069 = scmp.eq.s32.totalorder %s1068, 0
  %p1070 = pneg %p1069
  %1072 = shalt.err (%p1070)

</llo_original>
